<compile_context>
chip_gen: v7x
topology: tpu7x:2x2x1
jax: 0.10.0
libtpu: 0.0.40
codegen_flags: <defaults>
</compile_context>

<pallas_src>
import jax
import jax.numpy as jnp
from jax.experimental import pallas as pl
from jax.experimental.pallas import tpu as pltpu

LANE_TILE = 128
MAX_BLOCK_ROWS = 1024          # per-channel rows per tile (x C channels per step)
EPS = 1e-5
LOG_CLAMP = -100.0             # F.binary_cross_entropy clamps log outputs at -100


def _pick_row_block(r, max_rows=MAX_BLOCK_ROWS):
    """Row-block size: full R if it fits, else largest divisor <= max_rows,
    preferring multiples of 8 (dense sublanes / legal (8,128) tiling)."""
    if r <= max_rows:
        return r
    best, best8 = 1, None
    for d in range(1, max_rows + 1):
        if r % d == 0:
            best = d
            if d % 8 == 0:
                best8 = d
    return best8 if best8 is not None else best


def _dsbce_dice_partial_kernel(p_ref, t_ref, out_ref):
    """Per-batch streaming reduction over row-blocks, all channels per step.

    p_ref:   (C, ROW_BLK, 128)  probability tile (all channels) of batch b
    t_ref:   (ROW_BLK, 128)     target tile of batch b
    out_ref: (4*C, 128)         lane partials, resident across the K axis.
             For channel c (rows 4c .. 4c+3):
               4c+0: sum of  t*log(p_c) + (1-t)*log(1-p_c)  (negated in wrapper)
               4c+1: sum of  p_c*t
               4c+2: sum of  p_c
               4c+3: sum of  t   (only written for c == 0; identical per channel)
    """
    k = pl.program_id(1)

    @pl.when(k == 0)
    def _init():
        out_ref[...] = jnp.zeros_like(out_ref)

    t = t_ref[...].astype(jnp.float32)

    # Target sum is channel-independent: compute/accumulate it exactly once.
    out_ref[3:4, :] += jnp.sum(t, axis=0, keepdims=True)

    num_ch = p_ref.shape[0]
    for c in range(num_ch):                       # static unrolled loop (C = 5)
        p = p_ref[c, :, :].astype(jnp.float32)

        log_p = jnp.maximum(jnp.log(p), LOG_CLAMP)
        log_1mp = jnp.maximum(jnp.log(1.0 - p), LOG_CLAMP)

        # == t*log(p) + (1-t)*log(1-p), with one fewer multiply/add per element.
        bce_pos = t * (log_p - log_1mp) + log_1mp

        base = 4 * c
        out_ref[base + 0:base + 1, :] += jnp.sum(bce_pos, axis=0, keepdims=True)
        out_ref[base + 1:base + 2, :] += jnp.sum(p * t, axis=0, keepdims=True)
        out_ref[base + 2:base + 3, :] += jnp.sum(p, axis=0, keepdims=True)


def ds_bce_dice_loss(inputs, target):
    """inputs: (B, C=5, H, W) probabilities; target: (B, H, W). Returns scalar loss."""
    if isinstance(target, tuple):                 # mirror the PyTorch module
        target = target[0]

    B, C, H, W = inputs.shape
    assert target.shape == (B, H, W)
    HW = H * W
    assert HW % LANE_TILE == 0, "H*W must be a multiple of 128"
    # TODO(synk): pad H*W to a multiple of 128 with explicit masking (mask must exclude
    # padded elements from the BCE mean, inter and p/t sums) for arbitrary spatial sizes.

    R = HW // LANE_TILE
    row_blk = _pick_row_block(R)
    K = R // row_blk

    # Free, contiguous views — no transpose, no dtype cast (bf16 streams as bf16).
    p4d = inputs.reshape(B, C, R, LANE_TILE)
    t3d = target.reshape(B, R, LANE_TILE)

    partials = pl.pallas_call(
        _dsbce_dice_partial_kernel,
        out_shape=jax.ShapeDtypeStruct((B, 4 * C, LANE_TILE), jnp.float32),
        grid_spec=pltpu.PrefetchScalarGridSpec(
            num_scalar_prefetch=0,
            grid=(B, K),
            in_specs=[
                # all channels of one batch, one row-block per step
                pl.BlockSpec((None, C, row_blk, LANE_TILE),
                             lambda b, k: (b, 0, k, 0)),
                # the matching target row-block, loaded once per step
                pl.BlockSpec((None, row_blk, LANE_TILE),
                             lambda b, k: (b, k, 0)),
            ],
            out_specs=pl.BlockSpec((None, 4 * C, LANE_TILE),
                                   lambda b, k: (b, 0, 0)),
        ),
        compiler_params=pltpu.CompilerParams(
            dimension_semantics=("parallel", "arbitrary")),
    )(p4d, t3d)

    # Tiny finalization in plain JAX: reduce over batch + lanes, combine BCE/Dice.
    sums = jnp.sum(partials, axis=(0, 2)).reshape(C, 4)   # (C, 4)
    n = jnp.float32(B * HW)
    bce = -sums[:, 0] / n
    inter = sums[:, 1]
    p_sum = sums[:, 2]
    t_sum = sums[0, 3]                                     # same for every channel
    dice = (2.0 * inter + EPS) / (p_sum + t_sum + EPS)
    return jnp.sum(bce + 1.0 - dice)


def _reference_loss(inputs, target):
    """Pure-JAX reference mirroring the PyTorch module."""
    def bce_dice(p, t):
        log_p = jnp.maximum(jnp.log(p), LOG_CLAMP)
        log_1mp = jnp.maximum(jnp.log(1.0 - p), LOG_CLAMP)
        bce = jnp.mean(-(t * log_p + (1.0 - t) * log_1mp))
        inter = jnp.sum(p * t)
        dice = (2.0 * inter + EPS) / (jnp.sum(p) + jnp.sum(t) + EPS)
        return bce + 1.0 - dice

    total = 0.0
    for c in range(inputs.shape[1]):
        total = total + bce_dice(inputs[:, c, :, :], target)
    return total


if __name__ == "__main__":
    key = jax.random.PRNGKey(0)
    k1, k2 = jax.random.split(key)

    B, C, H, W = 2, 5, 16, 16
    # Predictions are probabilities (post-sigmoid), targets are binary masks.
    inputs = jax.nn.sigmoid(jax.random.normal(k1, (B, C, H, W), dtype=jnp.float32))
    target = jax.random.bernoulli(k2, 0.5, (B, H, W)).astype(jnp.float32)

    loss = jax.block_until_ready(ds_bce_dice_loss(inputs, target))
    ref = jax.block_until_ready(_reference_loss(inputs, target))

    assert jnp.isfinite(loss), "non-finite loss"
    assert abs(float(loss) - float(ref)) < 1e-4, (float(loss), float(ref))
    print("KERNEL_OK")
</pallas_src>

<mosaic_0001>
module attributes {stable_mosaic.version = 11 : i64} {
  func.func @_dsbce_dice_partial_kernel(%arg0: i32, %arg1: i32, %arg2: memref<1x5x2x128xf32, #tpu.memory_space<vmem>>, %arg3: memref<1x2x128xf32, #tpu.memory_space<vmem>>, %arg4: memref<1x20x128xf32, #tpu.memory_space<vmem>>) attributes {dimension_semantics = [#tpu.dimension_semantics<parallel>, #tpu.dimension_semantics<arbitrary>], iteration_bounds = array<i64: 2, 1>, scalar_prefetch = 0 : i64, scratch_operands = 0 : i64, tpu.core_type = #tpu.core_type<tc>, window_params = [{transform_indices = @transform_0, window_bounds = array<i64: 1, 5, 2, 128>}, {transform_indices = @transform_1, window_bounds = array<i64: 1, 2, 128>}, {transform_indices = @transform_2, window_bounds = array<i64: 1, 20, 128>}]} {
    %c0_i32 = arith.constant 0 : i32
    %0 = arith.cmpi eq, %arg1, %c0_i32 : i32
    %1 = arith.extui %0 : i1 to i32
    %c0_i32_0 = arith.constant 0 : i32
    %2 = arith.cmpi ne, %1, %c0_i32_0 : i32
    scf.if %2 {
      %cst_134 = arith.constant 0.000000e+00 : f32
      %203 = vector.broadcast %cst_134 : f32 to vector<20x128xf32>
      %c0_135 = arith.constant 0 : index
      %c0_136 = arith.constant 0 : index
      %c0_137 = arith.constant 0 : index
      %204 = vector.load %arg4[%c0_135, %c0_136, %c0_137] : memref<1x20x128xf32, #tpu.memory_space<vmem>>, vector<1x20x128xf32>
      %205 = vector.shape_cast %204 : vector<1x20x128xf32> to vector<20x128xf32>
      %206 = vector.shape_cast %203 : vector<20x128xf32> to vector<1x20x128xf32>
      tpu.vector_store %arg4[%c0_135, %c0_136, %c0_137], %206 {strides = array<i32>} : memref<1x20x128xf32, #tpu.memory_space<vmem>>, vector<1x20x128xf32>,
    } else {
    }
    %c0 = arith.constant 0 : index
    %c0_1 = arith.constant 0 : index
    %c0_2 = arith.constant 0 : index
    %3 = vector.load %arg3[%c0, %c0_1, %c0_2] : memref<1x2x128xf32, #tpu.memory_space<vmem>>, vector<1x2x128xf32>
    %4 = vector.shape_cast %3 : vector<1x2x128xf32> to vector<2x128xf32>
    %c0_3 = arith.constant 0 : index
    %c3 = arith.constant 3 : index
    %c0_4 = arith.constant 0 : index
    %5 = vector.load %arg4[%c0_3, %c3, %c0_4] : memref<1x20x128xf32, #tpu.memory_space<vmem>>, vector<1x1x128xf32>
    %6 = vector.shape_cast %5 : vector<1x1x128xf32> to vector<1x128xf32>
    %cst = arith.constant dense<0.000000e+00> : vector<128xf32>
    %7 = vector.multi_reduction <add>, %4, %cst [0] : vector<2x128xf32> to vector<128xf32>
    %8 = vector.shape_cast %7 : vector<128xf32> to vector<1x128xf32>
    %9 = arith.addf %6, %8 : vector<1x128xf32>
    %c0_5 = arith.constant 0 : index
    %c3_6 = arith.constant 3 : index
    %c0_7 = arith.constant 0 : index
    %10 = vector.load %arg4[%c0_5, %c3_6, %c0_7] : memref<1x20x128xf32, #tpu.memory_space<vmem>>, vector<1x1x128xf32>
    %11 = vector.shape_cast %10 : vector<1x1x128xf32> to vector<1x128xf32>
    %12 = vector.shape_cast %9 : vector<1x128xf32> to vector<1x1x128xf32>
    tpu.vector_store %arg4[%c0_5, %c3_6, %c0_7], %12 {strides = array<i32>} : memref<1x20x128xf32, #tpu.memory_space<vmem>>, vector<1x1x128xf32>,
    %c0_8 = arith.constant 0 : index
    %c0_9 = arith.constant 0 : index
    %c0_10 = arith.constant 0 : index
    %c0_11 = arith.constant 0 : index
    %13 = vector.load %arg2[%c0_8, %c0_9, %c0_10, %c0_11] : memref<1x5x2x128xf32, #tpu.memory_space<vmem>>, vector<1x1x2x128xf32>
    %14 = vector.shape_cast %13 : vector<1x1x2x128xf32> to vector<2x128xf32>
    %15 = math.log %14 : vector<2x128xf32>
    %cst_12 = arith.constant -1.000000e+02 : f32
    %16 = vector.broadcast %cst_12 : f32 to vector<2x128xf32>
    %17 = arith.maximumf %15, %16 : vector<2x128xf32>
    %cst_13 = arith.constant 1.000000e+00 : f32
    %18 = vector.broadcast %cst_13 : f32 to vector<2x128xf32>
    %19 = arith.subf %18, %14 : vector<2x128xf32>
    %20 = math.log %19 : vector<2x128xf32>
    %cst_14 = arith.constant -1.000000e+02 : f32
    %21 = vector.broadcast %cst_14 : f32 to vector<2x128xf32>
    %22 = arith.maximumf %20, %21 : vector<2x128xf32>
    %23 = arith.subf %17, %22 : vector<2x128xf32>
    %24 = arith.mulf %4, %23 : vector<2x128xf32>
    %25 = arith.addf %24, %22 : vector<2x128xf32>
    %c0_15 = arith.constant 0 : index
    %c0_16 = arith.constant 0 : index
    %c0_17 = arith.constant 0 : index
    %26 = vector.load %arg4[%c0_15, %c0_16, %c0_17] : memref<1x20x128xf32, #tpu.memory_space<vmem>>, vector<1x1x128xf32>
    %27 = vector.shape_cast %26 : vector<1x1x128xf32> to vector<1x128xf32>
    %cst_18 = arith.constant dense<0.000000e+00> : vector<128xf32>
    %28 = vector.multi_reduction <add>, %25, %cst_18 [0] : vector<2x128xf32> to vector<128xf32>
    %29 = vector.shape_cast %28 : vector<128xf32> to vector<1x128xf32>
    %30 = arith.addf %27, %29 : vector<1x128xf32>
    %c0_19 = arith.constant 0 : index
    %c0_20 = arith.constant 0 : index
    %c0_21 = arith.constant 0 : index
    %31 = vector.load %arg4[%c0_19, %c0_20, %c0_21] : memref<1x20x128xf32, #tpu.memory_space<vmem>>, vector<1x1x128xf32>
    %32 = vector.shape_cast %31 : vector<1x1x128xf32> to vector<1x128xf32>
    %33 = vector.shape_cast %30 : vector<1x128xf32> to vector<1x1x128xf32>
    tpu.vector_store %arg4[%c0_19, %c0_20, %c0_21], %33 {strides = array<i32>} : memref<1x20x128xf32, #tpu.memory_space<vmem>>, vector<1x1x128xf32>,
    %c0_22 = arith.constant 0 : index
    %c1 = arith.constant 1 : index
    %c0_23 = arith.constant 0 : index
    %34 = vector.load %arg4[%c0_22, %c1, %c0_23] : memref<1x20x128xf32, #tpu.memory_space<vmem>>, vector<1x1x128xf32>
    %35 = vector.shape_cast %34 : vector<1x1x128xf32> to vector<1x128xf32>
    %36 = arith.mulf %14, %4 : vector<2x128xf32>
    %cst_24 = arith.constant dense<0.000000e+00> : vector<128xf32>
    %37 = vector.multi_reduction <add>, %36, %cst_24 [0] : vector<2x128xf32> to vector<128xf32>
    %38 = vector.shape_cast %37 : vector<128xf32> to vector<1x128xf32>
    %39 = arith.addf %35, %38 : vector<1x128xf32>
    %c0_25 = arith.constant 0 : index
    %c1_26 = arith.constant 1 : index
    %c0_27 = arith.constant 0 : index
    %40 = vector.load %arg4[%c0_25, %c1_26, %c0_27] : memref<1x20x128xf32, #tpu.memory_space<vmem>>, vector<1x1x128xf32>
    %41 = vector.shape_cast %40 : vector<1x1x128xf32> to vector<1x128xf32>
    %42 = vector.shape_cast %39 : vector<1x128xf32> to vector<1x1x128xf32>
    tpu.vector_store %arg4[%c0_25, %c1_26, %c0_27], %42 {strides = array<i32>} : memref<1x20x128xf32, #tpu.memory_space<vmem>>, vector<1x1x128xf32>,
    %c0_28 = arith.constant 0 : index
    %c2 = arith.constant 2 : index
    %c0_29 = arith.constant 0 : index
    %43 = vector.load %arg4[%c0_28, %c2, %c0_29] : memref<1x20x128xf32, #tpu.memory_space<vmem>>, vector<1x1x128xf32>
    %44 = vector.shape_cast %43 : vector<1x1x128xf32> to vector<1x128xf32>
    %cst_30 = arith.constant dense<0.000000e+00> : vector<128xf32>
    %45 = vector.multi_reduction <add>, %14, %cst_30 [0] : vector<2x128xf32> to vector<128xf32>
    %46 = vector.shape_cast %45 : vector<128xf32> to vector<1x128xf32>
    %47 = arith.addf %44, %46 : vector<1x128xf32>
    %c0_31 = arith.constant 0 : index
    %c2_32 = arith.constant 2 : index
    %c0_33 = arith.constant 0 : index
    %48 = vector.load %arg4[%c0_31, %c2_32, %c0_33] : memref<1x20x128xf32, #tpu.memory_space<vmem>>, vector<1x1x128xf32>
    %49 = vector.shape_cast %48 : vector<1x1x128xf32> to vector<1x128xf32>
    %50 = vector.shape_cast %47 : vector<1x128xf32> to vector<1x1x128xf32>
    tpu.vector_store %arg4[%c0_31, %c2_32, %c0_33], %50 {strides = array<i32>} : memref<1x20x128xf32, #tpu.memory_space<vmem>>, vector<1x1x128xf32>,
    %c0_34 = arith.constant 0 : index
    %c1_35 = arith.constant 1 : index
    %c0_36 = arith.constant 0 : index
    %c0_37 = arith.constant 0 : index
    %51 = vector.load %arg2[%c0_34, %c1_35, %c0_36, %c0_37] : memref<1x5x2x128xf32, #tpu.memory_space<vmem>>, vector<1x1x2x128xf32>
    %52 = vector.shape_cast %51 : vector<1x1x2x128xf32> to vector<2x128xf32>
    %53 = math.log %52 : vector<2x128xf32>
    %cst_38 = arith.constant -1.000000e+02 : f32
    %54 = vector.broadcast %cst_38 : f32 to vector<2x128xf32>
    %55 = arith.maximumf %53, %54 : vector<2x128xf32>
    %cst_39 = arith.constant 1.000000e+00 : f32
    %56 = vector.broadcast %cst_39 : f32 to vector<2x128xf32>
    %57 = arith.subf %56, %52 : vector<2x128xf32>
    %58 = math.log %57 : vector<2x128xf32>
    %cst_40 = arith.constant -1.000000e+02 : f32
    %59 = vector.broadcast %cst_40 : f32 to vector<2x128xf32>
    %60 = arith.maximumf %58, %59 : vector<2x128xf32>
    %61 = arith.subf %55, %60 : vector<2x128xf32>
    %62 = arith.mulf %4, %61 : vector<2x128xf32>
    %63 = arith.addf %62, %60 : vector<2x128xf32>
    %c0_41 = arith.constant 0 : index
    %c4 = arith.constant 4 : index
    %c0_42 = arith.constant 0 : index
    %64 = vector.load %arg4[%c0_41, %c4, %c0_42] : memref<1x20x128xf32, #tpu.memory_space<vmem>>, vector<1x1x128xf32>
    %65 = vector.shape_cast %64 : vector<1x1x128xf32> to vector<1x128xf32>
    %cst_43 = arith.constant dense<0.000000e+00> : vector<128xf32>
    %66 = vector.multi_reduction <add>, %63, %cst_43 [0] : vector<2x128xf32> to vector<128xf32>
    %67 = vector.shape_cast %66 : vector<128xf32> to vector<1x128xf32>
    %68 = arith.addf %65, %67 : vector<1x128xf32>
    %c0_44 = arith.constant 0 : index
    %c4_45 = arith.constant 4 : index
    %c0_46 = arith.constant 0 : index
    %69 = vector.load %arg4[%c0_44, %c4_45, %c0_46] : memref<1x20x128xf32, #tpu.memory_space<vmem>>, vector<1x1x128xf32>
    %70 = vector.shape_cast %69 : vector<1x1x128xf32> to vector<1x128xf32>
    %71 = vector.shape_cast %68 : vector<1x128xf32> to vector<1x1x128xf32>
    tpu.vector_store %arg4[%c0_44, %c4_45, %c0_46], %71 {strides = array<i32>} : memref<1x20x128xf32, #tpu.memory_space<vmem>>, vector<1x1x128xf32>,
    %c0_47 = arith.constant 0 : index
    %c5 = arith.constant 5 : index
    %c0_48 = arith.constant 0 : index
    %72 = vector.load %arg4[%c0_47, %c5, %c0_48] : memref<1x20x128xf32, #tpu.memory_space<vmem>>, vector<1x1x128xf32>
    %73 = vector.shape_cast %72 : vector<1x1x128xf32> to vector<1x128xf32>
    %74 = arith.mulf %52, %4 : vector<2x128xf32>
    %cst_49 = arith.constant dense<0.000000e+00> : vector<128xf32>
    %75 = vector.multi_reduction <add>, %74, %cst_49 [0] : vector<2x128xf32> to vector<128xf32>
    %76 = vector.shape_cast %75 : vector<128xf32> to vector<1x128xf32>
    %77 = arith.addf %73, %76 : vector<1x128xf32>
    %c0_50 = arith.constant 0 : index
    %c5_51 = arith.constant 5 : index
    %c0_52 = arith.constant 0 : index
    %78 = vector.load %arg4[%c0_50, %c5_51, %c0_52] : memref<1x20x128xf32, #tpu.memory_space<vmem>>, vector<1x1x128xf32>
    %79 = vector.shape_cast %78 : vector<1x1x128xf32> to vector<1x128xf32>
    %80 = vector.shape_cast %77 : vector<1x128xf32> to vector<1x1x128xf32>
    tpu.vector_store %arg4[%c0_50, %c5_51, %c0_52], %80 {strides = array<i32>} : memref<1x20x128xf32, #tpu.memory_space<vmem>>, vector<1x1x128xf32>,
    %c0_53 = arith.constant 0 : index
    %c6 = arith.constant 6 : index
    %c0_54 = arith.constant 0 : index
    %81 = vector.load %arg4[%c0_53, %c6, %c0_54] : memref<1x20x128xf32, #tpu.memory_space<vmem>>, vector<1x1x128xf32>
    %82 = vector.shape_cast %81 : vector<1x1x128xf32> to vector<1x128xf32>
    %cst_55 = arith.constant dense<0.000000e+00> : vector<128xf32>
    %83 = vector.multi_reduction <add>, %52, %cst_55 [0] : vector<2x128xf32> to vector<128xf32>
    %84 = vector.shape_cast %83 : vector<128xf32> to vector<1x128xf32>
    %85 = arith.addf %82, %84 : vector<1x128xf32>
    %c0_56 = arith.constant 0 : index
    %c6_57 = arith.constant 6 : index
    %c0_58 = arith.constant 0 : index
    %86 = vector.load %arg4[%c0_56, %c6_57, %c0_58] : memref<1x20x128xf32, #tpu.memory_space<vmem>>, vector<1x1x128xf32>
    %87 = vector.shape_cast %86 : vector<1x1x128xf32> to vector<1x128xf32>
    %88 = vector.shape_cast %85 : vector<1x128xf32> to vector<1x1x128xf32>
    tpu.vector_store %arg4[%c0_56, %c6_57, %c0_58], %88 {strides = array<i32>} : memref<1x20x128xf32, #tpu.memory_space<vmem>>, vector<1x1x128xf32>,
    %c0_59 = arith.constant 0 : index
    %c2_60 = arith.constant 2 : index
    %c0_61 = arith.constant 0 : index
    %c0_62 = arith.constant 0 : index
    %89 = vector.load %arg2[%c0_59, %c2_60, %c0_61, %c0_62] : memref<1x5x2x128xf32, #tpu.memory_space<vmem>>, vector<1x1x2x128xf32>
    %90 = vector.shape_cast %89 : vector<1x1x2x128xf32> to vector<2x128xf32>
    %91 = math.log %90 : vector<2x128xf32>
    %cst_63 = arith.constant -1.000000e+02 : f32
    %92 = vector.broadcast %cst_63 : f32 to vector<2x128xf32>
    %93 = arith.maximumf %91, %92 : vector<2x128xf32>
    %cst_64 = arith.constant 1.000000e+00 : f32
    %94 = vector.broadcast %cst_64 : f32 to vector<2x128xf32>
    %95 = arith.subf %94, %90 : vector<2x128xf32>
    %96 = math.log %95 : vector<2x128xf32>
    %cst_65 = arith.constant -1.000000e+02 : f32
    %97 = vector.broadcast %cst_65 : f32 to vector<2x128xf32>
    %98 = arith.maximumf %96, %97 : vector<2x128xf32>
    %99 = arith.subf %93, %98 : vector<2x128xf32>
    %100 = arith.mulf %4, %99 : vector<2x128xf32>
    %101 = arith.addf %100, %98 : vector<2x128xf32>
    %c0_66 = arith.constant 0 : index
    %c8 = arith.constant 8 : index
    %c0_67 = arith.constant 0 : index
    %102 = vector.load %arg4[%c0_66, %c8, %c0_67] : memref<1x20x128xf32, #tpu.memory_space<vmem>>, vector<1x1x128xf32>
    %103 = vector.shape_cast %102 : vector<1x1x128xf32> to vector<1x128xf32>
    %cst_68 = arith.constant dense<0.000000e+00> : vector<128xf32>
    %104 = vector.multi_reduction <add>, %101, %cst_68 [0] : vector<2x128xf32> to vector<128xf32>
    %105 = vector.shape_cast %104 : vector<128xf32> to vector<1x128xf32>
    %106 = arith.addf %103, %105 : vector<1x128xf32>
    %c0_69 = arith.constant 0 : index
    %c8_70 = arith.constant 8 : index
    %c0_71 = arith.constant 0 : index
    %107 = vector.load %arg4[%c0_69, %c8_70, %c0_71] : memref<1x20x128xf32, #tpu.memory_space<vmem>>, vector<1x1x128xf32>
    %108 = vector.shape_cast %107 : vector<1x1x128xf32> to vector<1x128xf32>
    %109 = vector.shape_cast %106 : vector<1x128xf32> to vector<1x1x128xf32>
    tpu.vector_store %arg4[%c0_69, %c8_70, %c0_71], %109 {strides = array<i32>} : memref<1x20x128xf32, #tpu.memory_space<vmem>>, vector<1x1x128xf32>,
    %c0_72 = arith.constant 0 : index
    %c9 = arith.constant 9 : index
    %c0_73 = arith.constant 0 : index
    %110 = vector.load %arg4[%c0_72, %c9, %c0_73] : memref<1x20x128xf32, #tpu.memory_space<vmem>>, vector<1x1x128xf32>
    %111 = vector.shape_cast %110 : vector<1x1x128xf32> to vector<1x128xf32>
    %112 = arith.mulf %90, %4 : vector<2x128xf32>
    %cst_74 = arith.constant dense<0.000000e+00> : vector<128xf32>
    %113 = vector.multi_reduction <add>, %112, %cst_74 [0] : vector<2x128xf32> to vector<128xf32>
    %114 = vector.shape_cast %113 : vector<128xf32> to vector<1x128xf32>
    %115 = arith.addf %111, %114 : vector<1x128xf32>
    %c0_75 = arith.constant 0 : index
    %c9_76 = arith.constant 9 : index
    %c0_77 = arith.constant 0 : index
    %116 = vector.load %arg4[%c0_75, %c9_76, %c0_77] : memref<1x20x128xf32, #tpu.memory_space<vmem>>, vector<1x1x128xf32>
    %117 = vector.shape_cast %116 : vector<1x1x128xf32> to vector<1x128xf32>
    %118 = vector.shape_cast %115 : vector<1x128xf32> to vector<1x1x128xf32>
    tpu.vector_store %arg4[%c0_75, %c9_76, %c0_77], %118 {strides = array<i32>} : memref<1x20x128xf32, #tpu.memory_space<vmem>>, vector<1x1x128xf32>,
    %c0_78 = arith.constant 0 : index
    %c10 = arith.constant 10 : index
    %c0_79 = arith.constant 0 : index
    %119 = vector.load %arg4[%c0_78, %c10, %c0_79] : memref<1x20x128xf32, #tpu.memory_space<vmem>>, vector<1x1x128xf32>
    %120 = vector.shape_cast %119 : vector<1x1x128xf32> to vector<1x128xf32>
    %cst_80 = arith.constant dense<0.000000e+00> : vector<128xf32>
    %121 = vector.multi_reduction <add>, %90, %cst_80 [0] : vector<2x128xf32> to vector<128xf32>
    %122 = vector.shape_cast %121 : vector<128xf32> to vector<1x128xf32>
    %123 = arith.addf %120, %122 : vector<1x128xf32>
    %c0_81 = arith.constant 0 : index
    %c10_82 = arith.constant 10 : index
    %c0_83 = arith.constant 0 : index
    %124 = vector.load %arg4[%c0_81, %c10_82, %c0_83] : memref<1x20x128xf32, #tpu.memory_space<vmem>>, vector<1x1x128xf32>
    %125 = vector.shape_cast %124 : vector<1x1x128xf32> to vector<1x128xf32>
    %126 = vector.shape_cast %123 : vector<1x128xf32> to vector<1x1x128xf32>
    tpu.vector_store %arg4[%c0_81, %c10_82, %c0_83], %126 {strides = array<i32>} : memref<1x20x128xf32, #tpu.memory_space<vmem>>, vector<1x1x128xf32>,
    %c0_84 = arith.constant 0 : index
    %c3_85 = arith.constant 3 : index
    %c0_86 = arith.constant 0 : index
    %c0_87 = arith.constant 0 : index
    %127 = vector.load %arg2[%c0_84, %c3_85, %c0_86, %c0_87] : memref<1x5x2x128xf32, #tpu.memory_space<vmem>>, vector<1x1x2x128xf32>
    %128 = vector.shape_cast %127 : vector<1x1x2x128xf32> to vector<2x128xf32>
    %129 = math.log %128 : vector<2x128xf32>
    %cst_88 = arith.constant -1.000000e+02 : f32
    %130 = vector.broadcast %cst_88 : f32 to vector<2x128xf32>
    %131 = arith.maximumf %129, %130 : vector<2x128xf32>
    %cst_89 = arith.constant 1.000000e+00 : f32
    %132 = vector.broadcast %cst_89 : f32 to vector<2x128xf32>
    %133 = arith.subf %132, %128 : vector<2x128xf32>
    %134 = math.log %133 : vector<2x128xf32>
    %cst_90 = arith.constant -1.000000e+02 : f32
    %135 = vector.broadcast %cst_90 : f32 to vector<2x128xf32>
    %136 = arith.maximumf %134, %135 : vector<2x128xf32>
    %137 = arith.subf %131, %136 : vector<2x128xf32>
    %138 = arith.mulf %4, %137 : vector<2x128xf32>
    %139 = arith.addf %138, %136 : vector<2x128xf32>
    %c0_91 = arith.constant 0 : index
    %c12 = arith.constant 12 : index
    %c0_92 = arith.constant 0 : index
    %140 = vector.load %arg4[%c0_91, %c12, %c0_92] : memref<1x20x128xf32, #tpu.memory_space<vmem>>, vector<1x1x128xf32>
    %141 = vector.shape_cast %140 : vector<1x1x128xf32> to vector<1x128xf32>
    %cst_93 = arith.constant dense<0.000000e+00> : vector<128xf32>
    %142 = vector.multi_reduction <add>, %139, %cst_93 [0] : vector<2x128xf32> to vector<128xf32>
    %143 = vector.shape_cast %142 : vector<128xf32> to vector<1x128xf32>
    %144 = arith.addf %141, %143 : vector<1x128xf32>
    %c0_94 = arith.constant 0 : index
    %c12_95 = arith.constant 12 : index
    %c0_96 = arith.constant 0 : index
    %145 = vector.load %arg4[%c0_94, %c12_95, %c0_96] : memref<1x20x128xf32, #tpu.memory_space<vmem>>, vector<1x1x128xf32>
    %146 = vector.shape_cast %145 : vector<1x1x128xf32> to vector<1x128xf32>
    %147 = vector.shape_cast %144 : vector<1x128xf32> to vector<1x1x128xf32>
    tpu.vector_store %arg4[%c0_94, %c12_95, %c0_96], %147 {strides = array<i32>} : memref<1x20x128xf32, #tpu.memory_space<vmem>>, vector<1x1x128xf32>,
    %c0_97 = arith.constant 0 : index
    %c13 = arith.constant 13 : index
    %c0_98 = arith.constant 0 : index
    %148 = vector.load %arg4[%c0_97, %c13, %c0_98] : memref<1x20x128xf32, #tpu.memory_space<vmem>>, vector<1x1x128xf32>
    %149 = vector.shape_cast %148 : vector<1x1x128xf32> to vector<1x128xf32>
    %150 = arith.mulf %128, %4 : vector<2x128xf32>
    %cst_99 = arith.constant dense<0.000000e+00> : vector<128xf32>
    %151 = vector.multi_reduction <add>, %150, %cst_99 [0] : vector<2x128xf32> to vector<128xf32>
    %152 = vector.shape_cast %151 : vector<128xf32> to vector<1x128xf32>
    %153 = arith.addf %149, %152 : vector<1x128xf32>
    %c0_100 = arith.constant 0 : index
    %c13_101 = arith.constant 13 : index
    %c0_102 = arith.constant 0 : index
    %154 = vector.load %arg4[%c0_100, %c13_101, %c0_102] : memref<1x20x128xf32, #tpu.memory_space<vmem>>, vector<1x1x128xf32>
    %155 = vector.shape_cast %154 : vector<1x1x128xf32> to vector<1x128xf32>
    %156 = vector.shape_cast %153 : vector<1x128xf32> to vector<1x1x128xf32>
    tpu.vector_store %arg4[%c0_100, %c13_101, %c0_102], %156 {strides = array<i32>} : memref<1x20x128xf32, #tpu.memory_space<vmem>>, vector<1x1x128xf32>,
    %c0_103 = arith.constant 0 : index
    %c14 = arith.constant 14 : index
    %c0_104 = arith.constant 0 : index
    %157 = vector.load %arg4[%c0_103, %c14, %c0_104] : memref<1x20x128xf32, #tpu.memory_space<vmem>>, vector<1x1x128xf32>
    %158 = vector.shape_cast %157 : vector<1x1x128xf32> to vector<1x128xf32>
    %cst_105 = arith.constant dense<0.000000e+00> : vector<128xf32>
    %159 = vector.multi_reduction <add>, %128, %cst_105 [0] : vector<2x128xf32> to vector<128xf32>
    %160 = vector.shape_cast %159 : vector<128xf32> to vector<1x128xf32>
    %161 = arith.addf %158, %160 : vector<1x128xf32>
    %c0_106 = arith.constant 0 : index
    %c14_107 = arith.constant 14 : index
    %c0_108 = arith.constant 0 : index
    %162 = vector.load %arg4[%c0_106, %c14_107, %c0_108] : memref<1x20x128xf32, #tpu.memory_space<vmem>>, vector<1x1x128xf32>
    %163 = vector.shape_cast %162 : vector<1x1x128xf32> to vector<1x128xf32>
    %164 = vector.shape_cast %161 : vector<1x128xf32> to vector<1x1x128xf32>
    tpu.vector_store %arg4[%c0_106, %c14_107, %c0_108], %164 {strides = array<i32>} : memref<1x20x128xf32, #tpu.memory_space<vmem>>, vector<1x1x128xf32>,
    %c0_109 = arith.constant 0 : index
    %c4_110 = arith.constant 4 : index
    %c0_111 = arith.constant 0 : index
    %c0_112 = arith.constant 0 : index
    %165 = vector.load %arg2[%c0_109, %c4_110, %c0_111, %c0_112] : memref<1x5x2x128xf32, #tpu.memory_space<vmem>>, vector<1x1x2x128xf32>
    %166 = vector.shape_cast %165 : vector<1x1x2x128xf32> to vector<2x128xf32>
    %167 = math.log %166 : vector<2x128xf32>
    %cst_113 = arith.constant -1.000000e+02 : f32
    %168 = vector.broadcast %cst_113 : f32 to vector<2x128xf32>
    %169 = arith.maximumf %167, %168 : vector<2x128xf32>
    %cst_114 = arith.constant 1.000000e+00 : f32
    %170 = vector.broadcast %cst_114 : f32 to vector<2x128xf32>
    %171 = arith.subf %170, %166 : vector<2x128xf32>
    %172 = math.log %171 : vector<2x128xf32>
    %cst_115 = arith.constant -1.000000e+02 : f32
    %173 = vector.broadcast %cst_115 : f32 to vector<2x128xf32>
    %174 = arith.maximumf %172, %173 : vector<2x128xf32>
    %175 = arith.subf %169, %174 : vector<2x128xf32>
    %176 = arith.mulf %4, %175 : vector<2x128xf32>
    %177 = arith.addf %176, %174 : vector<2x128xf32>
    %c0_116 = arith.constant 0 : index
    %c16 = arith.constant 16 : index
    %c0_117 = arith.constant 0 : index
    %178 = vector.load %arg4[%c0_116, %c16, %c0_117] : memref<1x20x128xf32, #tpu.memory_space<vmem>>, vector<1x1x128xf32>
    %179 = vector.shape_cast %178 : vector<1x1x128xf32> to vector<1x128xf32>
    %cst_118 = arith.constant dense<0.000000e+00> : vector<128xf32>
    %180 = vector.multi_reduction <add>, %177, %cst_118 [0] : vector<2x128xf32> to vector<128xf32>
    %181 = vector.shape_cast %180 : vector<128xf32> to vector<1x128xf32>
    %182 = arith.addf %179, %181 : vector<1x128xf32>
    %c0_119 = arith.constant 0 : index
    %c16_120 = arith.constant 16 : index
    %c0_121 = arith.constant 0 : index
    %183 = vector.load %arg4[%c0_119, %c16_120, %c0_121] : memref<1x20x128xf32, #tpu.memory_space<vmem>>, vector<1x1x128xf32>
    %184 = vector.shape_cast %183 : vector<1x1x128xf32> to vector<1x128xf32>
    %185 = vector.shape_cast %182 : vector<1x128xf32> to vector<1x1x128xf32>
    tpu.vector_store %arg4[%c0_119, %c16_120, %c0_121], %185 {strides = array<i32>} : memref<1x20x128xf32, #tpu.memory_space<vmem>>, vector<1x1x128xf32>,
    %c0_122 = arith.constant 0 : index
    %c17 = arith.constant 17 : index
    %c0_123 = arith.constant 0 : index
    %186 = vector.load %arg4[%c0_122, %c17, %c0_123] : memref<1x20x128xf32, #tpu.memory_space<vmem>>, vector<1x1x128xf32>
    %187 = vector.shape_cast %186 : vector<1x1x128xf32> to vector<1x128xf32>
    %188 = arith.mulf %166, %4 : vector<2x128xf32>
    %cst_124 = arith.constant dense<0.000000e+00> : vector<128xf32>
    %189 = vector.multi_reduction <add>, %188, %cst_124 [0] : vector<2x128xf32> to vector<128xf32>
    %190 = vector.shape_cast %189 : vector<128xf32> to vector<1x128xf32>
    %191 = arith.addf %187, %190 : vector<1x128xf32>
    %c0_125 = arith.constant 0 : index
    %c17_126 = arith.constant 17 : index
    %c0_127 = arith.constant 0 : index
    %192 = vector.load %arg4[%c0_125, %c17_126, %c0_127] : memref<1x20x128xf32, #tpu.memory_space<vmem>>, vector<1x1x128xf32>
    %193 = vector.shape_cast %192 : vector<1x1x128xf32> to vector<1x128xf32>
    %194 = vector.shape_cast %191 : vector<1x128xf32> to vector<1x1x128xf32>
    tpu.vector_store %arg4[%c0_125, %c17_126, %c0_127], %194 {strides = array<i32>} : memref<1x20x128xf32, #tpu.memory_space<vmem>>, vector<1x1x128xf32>,
    %c0_128 = arith.constant 0 : index
    %c18 = arith.constant 18 : index
    %c0_129 = arith.constant 0 : index
    %195 = vector.load %arg4[%c0_128, %c18, %c0_129] : memref<1x20x128xf32, #tpu.memory_space<vmem>>, vector<1x1x128xf32>
    %196 = vector.shape_cast %195 : vector<1x1x128xf32> to vector<1x128xf32>
    %cst_130 = arith.constant dense<0.000000e+00> : vector<128xf32>
    %197 = vector.multi_reduction <add>, %166, %cst_130 [0] : vector<2x128xf32> to vector<128xf32>
    %198 = vector.shape_cast %197 : vector<128xf32> to vector<1x128xf32>
    %199 = arith.addf %196, %198 : vector<1x128xf32>
    %c0_131 = arith.constant 0 : index
    %c18_132 = arith.constant 18 : index
    %c0_133 = arith.constant 0 : index
    %200 = vector.load %arg4[%c0_131, %c18_132, %c0_133] : memref<1x20x128xf32, #tpu.memory_space<vmem>>, vector<1x1x128xf32>
    %201 = vector.shape_cast %200 : vector<1x1x128xf32> to vector<1x128xf32>
    %202 = vector.shape_cast %199 : vector<1x128xf32> to vector<1x1x128xf32>
    tpu.vector_store %arg4[%c0_131, %c18_132, %c0_133], %202 {strides = array<i32>} : memref<1x20x128xf32, #tpu.memory_space<vmem>>, vector<1x1x128xf32>,
    return
  }
  func.func @transform_0(%arg0: i32, %arg1: i32) -> (i32, i32, i32, i32) {
    %c0_i32 = arith.constant 0 : i32
    %c0_i32_0 = arith.constant 0 : i32
    %c0_i32_1 = arith.constant 0 : i32
    return %arg0, %c0_i32, %arg1, %c0_i32_0 : i32, i32, i32, i32
  }
  func.func @transform_1(%arg0: i32, %arg1: i32) -> (i32, i32, i32) {
    %c0_i32 = arith.constant 0 : i32
    %c0_i32_0 = arith.constant 0 : i32
    return %arg0, %arg1, %c0_i32 : i32, i32, i32
  }
  func.func @transform_2(%arg0: i32, %arg1: i32) -> (i32, i32, i32) {
    %c0_i32 = arith.constant 0 : i32
    %c0_i32_0 = arith.constant 0 : i32
    %c0_i32_1 = arith.constant 0 : i32
    return %arg0, %c0_i32, %c0_i32_0 : i32, i32, i32
  }
}

</mosaic_0001>

<llo_original>
// kernel: tpu_custom_call.1
$region0: #{tpu_custom_call.1}
  #allocation0 [shape = 'u32[]', space=smem, size = 0x4, offset = 0x4, fixed_abs, tag = 'smem constant byte address 0x4 - core index']
  #allocation1 [shape = 'u32[144,128]{1,0:T(1,128)}', space=vmem, size = 0x12000, scoped, tag = 'internal scratch']
  %s0 = inlined_call_operand.hbm [shape: f32[2,5,2,128], index: 0, kind: input, shape index: {}]
  %s1 = inlined_call_operand.hbm [shape: f32[2,2,128], index: 1, kind: input, shape index: {}]
  %s2 = inlined_call_operand.vmem [shape: f32[2,20,128], index: 2, kind: output, shape index: {}]
  %s3 = sld [smem:[#allocation0]]
  $region53: #{tpu_custom_call.1} parent=0
    _
  %s5 = ssub.s32 1, %s3
  %s6 = scalar_select 0, %s5, %s3
  $region1: #{tpu_custom_call.1} parent=0
    #allocation2 [shape = 'u8[10240]{0}', space=vmem, size = 0x2800, scoped, tag = 'input window, operand 0']
    #allocation3 [shape = 's32[2]{0}', space=sflag, size = 0x8, scoped, tag = 'scoped memory for tpu_custom_call.1']
    #allocation4 [shape = 'u8[2048]{0}', space=vmem, size = 0x800, scoped, tag = 'input window, operand 1']
    #allocation5 [shape = 's32[2]{0}', space=sflag, size = 0x8, scoped, tag = 'scoped memory for tpu_custom_call.1']
    %7 = vsyncpa [#allocation3], 0
    %s8 = scalar_lea.sflag [#allocation3], 1
    %9 = vsyncpa %s8, 0
    %10 = vsyncpa [#allocation5], 0
    %s11 = scalar_lea.sflag [#allocation5], 1
    %12 = vsyncpa %s11, 0
    loop: start=0, step=1, limit=4
    $region2: #{tpu_custom_call.1} parent=1 // loop_pre_header
      _
    $region3: #{tpu_custom_call.1} parent=1 // loop_header
      %s14 = sphi 0, %s18
      %p15 = scmp.ge.s32.totalorder %s14, 4
      %s21 = sphi 0, %s33
      %s22 = sphi 0, %s29
      %s23 = sphi 0, %s21
      %s24 = sphi 0, %s22
      %s25 = sphi 0, %s23
      %s26 = sphi 0, %s24
      %s38 = sphi 0, %s40
      %s41 = sphi 0, %s38
      %s42 = sphi 0, %s41
      %s58 = sphi 0, %s42
      %s66 = sphi 0, %s68
      %s69 = sphi 0, %s66
      %s70 = sphi 0, %s69
      %s86 = sphi 0, %s70
      %s92 = sphi 0, %s94
      %s95 = sphi 0, %s92
      %s96 = sphi 0, %s95
      %s112 = sphi 0, %s96
    $region4: #{tpu_custom_call.1} parent=1 // loop_header_branch
      %17 = sbr.rel (%p15) target = $region8
    $region5: #{tpu_custom_call.1} parent=1 // loop_body
      %s19 = ssub.s32 %s14, 1
      %s20 = ssub.s32 %s14, 2
      %s27 = sadd.s32 1, %s22
      %p28 = scmp.ge.s32.totalorder %s27, 1
      %s29 = scalar_select %p28, 0, %s27
      %s30 = sadd.s32 1, %s21
      %s31 = scalar_select %p28, %s30, %s21
      %p32 = scmp.ge.s32.totalorder %s31, 2
      %s33 = scalar_select %p32, 0, %s31
      %s34 = ssub.s32 %s21, %s33
      %s35 = ssub.s32 %s22, %s29
      %s36 = sor.u32 %s34, %s35
      %p37 = scmp.eq.s32.totalorder %s36, 0
      %s39 = sadd.s32 %s38, 1
      %s40 = scalar_select %p37, %s38, %s39
      %p43 = pneg %p37
      %p44 = scmp.eq.s32.totalorder %s14, 1
      %p45 = por %p43, %p44
      %p46 = scmp.ne.s32.totalorder %s38, %s41
      %p47 = scmp.eq.s32.totalorder %s14, 0
      %p48 = por %p46, %p47
      %p49 = scmp.ne.s32.totalorder %s38, %s41
      %p50 = scmp.eq.s32.totalorder %s19, 1
      %p51 = por %p49, %p50
      %p52 = scmp.ne.s32.totalorder %s41, %s42
      %p53 = scmp.eq.s32.totalorder %s19, 0
      %p54 = por %p52, %p53
      %p55 = scmp.ne.s32.totalorder %s41, %s42
      %p56 = scmp.eq.s32.totalorder %s20, 1
      %p57 = por %p55, %p56
      %p59 = scmp.ne.s32.totalorder %s42, %s58
      %p60 = scmp.eq.s32.totalorder %s20, 0
      %p61 = por %p59, %p60
      %s62 = ssub.s32 %s21, %s33
      %s63 = ssub.s32 %s22, %s29
      %s64 = sor.u32 %s62, %s63
      %p65 = scmp.eq.s32.totalorder %s64, 0
      %s67 = sadd.s32 %s66, 1
      %s68 = scalar_select %p65, %s66, %s67
      %p71 = pneg %p65
      %p72 = scmp.eq.s32.totalorder %s14, 1
      %p73 = por %p71, %p72
      %p74 = scmp.ne.s32.totalorder %s66, %s69
      %p75 = scmp.eq.s32.totalorder %s14, 0
      %p76 = por %p74, %p75
      %p77 = scmp.ne.s32.totalorder %s66, %s69
      %p78 = scmp.eq.s32.totalorder %s19, 1
      %p79 = por %p77, %p78
      %p80 = scmp.ne.s32.totalorder %s69, %s70
      %p81 = scmp.eq.s32.totalorder %s19, 0
      %p82 = por %p80, %p81
      %p83 = scmp.ne.s32.totalorder %s69, %s70
      %p84 = scmp.eq.s32.totalorder %s20, 1
      %p85 = por %p83, %p84
      %p87 = scmp.ne.s32.totalorder %s70, %s86
      %p88 = scmp.eq.s32.totalorder %s20, 0
      %p89 = por %p87, %p88
      %s90 = ssub.s32 %s21, %s33
      %p91 = scmp.eq.s32.totalorder %s90, 0
      %s93 = sadd.s32 %s92, 1
      %s94 = scalar_select %p91, %s92, %s93
      %p97 = pneg %p91
      %p98 = scmp.eq.s32.totalorder %s14, 1
      %p99 = por %p97, %p98
      %p100 = scmp.ne.s32.totalorder %s92, %s95
      %p101 = scmp.eq.s32.totalorder %s14, 0
      %p102 = por %p100, %p101
      %p103 = scmp.ne.s32.totalorder %s92, %s95
      %p104 = scmp.eq.s32.totalorder %s19, 1
      %p105 = por %p103, %p104
      %p106 = scmp.ne.s32.totalorder %s95, %s96
      %p107 = scmp.eq.s32.totalorder %s19, 0
      %p108 = por %p106, %p107
      %p109 = scmp.ne.s32.totalorder %s95, %s96
      %p110 = scmp.eq.s32.totalorder %s20, 1
      %p111 = por %p109, %p110
      %p113 = scmp.ne.s32.totalorder %s96, %s112
      %p114 = scmp.eq.s32.totalorder %s20, 0
      %p115 = por %p113, %p114
      %p116 = scmp.le.s32.totalorder 1, %s14
      %p117 = scmp.lt.s32.totalorder %s14, 3
      %p118 = pnand %p116, %p117
      %p119 = pneg %p118
      // Predicated region
      $region9: #{tpu_custom_call.1} parent=5 // pred_check
        _
      $region10: #{tpu_custom_call.1} parent=5 // pred_check_branch
        %121 = sbr.rel (%p118) target = $region12
      $region11: #{tpu_custom_call.1} parent=5 // pred_region
        %s122 = ssub.s32 %s14, 1
      $region12: #{tpu_custom_call.1} parent=5 // pred_fallthru
        _
      %p123 = scmp.lt.s32.totalorder %s14, 2
      // Predicated region
      $region13: #{tpu_custom_call.1} parent=5 // pred_check
        %p124 = pneg %p123
      $region14: #{tpu_custom_call.1} parent=5 // pred_check_branch
        %126 = sbr.rel (%p124) target = $region16
      $region15: #{tpu_custom_call.1} parent=5 // pred_region
        // Predicated region
        $region17: #{tpu_custom_call.1} parent=15 // pred_check
          %p127 = pneg %p48
        $region18: #{tpu_custom_call.1} parent=15 // pred_check_branch
          %129 = sbr.rel (%p127) target = $region20
        $region19: #{tpu_custom_call.1} parent=15 // pred_region
          %s130 = sand.u32 %s38, 1
          %s131 = scalar_lea.sflag [#allocation3], %s130
          %s132 = sand.u32 %s38, 1
          %s133 = smul.addr %s132, 10
          %s134 = scalar_lea.vmem [#allocation2], %s133
          %s136 = ssub.s32 160, 160
          %137 = vsyncadd %s131, %s136
          %s138 = smul.addr %s21, 5
          %s139 = sadd.s32 %s22, %s138
          %s140 = smul.addr %s139, 32
          %s141 = scalar_lea.hbm %s0, %s140
          %s142 = sshll.u32 %s134, 4
          %s143 = int_to_ptr.vmem [resolvable:$true] %s142
          %148 = dma.hbm_to_vmem [thread:$0]  %s141, 160, %s143, %s131, 32, 32, 2
        $region20: #{tpu_custom_call.1} parent=15 // pred_fallthru
          _
        // Predicated region
        $region21: #{tpu_custom_call.1} parent=15 // pred_check
          %p149 = pneg %p76
        $region22: #{tpu_custom_call.1} parent=15 // pred_check_branch
          %151 = sbr.rel (%p149) target = $region24
        $region23: #{tpu_custom_call.1} parent=15 // pred_region
          %s152 = sand.u32 %s66, 1
          %s153 = scalar_lea.sflag [#allocation5], %s152
          %s154 = sand.u32 %s66, 1
          %s155 = smul.addr %s154, 2
          %s156 = scalar_lea.vmem [#allocation4], %s155
          %s158 = ssub.s32 32, 32
          %159 = vsyncadd %s153, %s158
          %s160 = sadd.s32 %s22, %s21
          %s161 = smul.addr %s160, 32
          %s162 = scalar_lea.hbm %s1, %s161
          %s164 = sshll.u32 %s156, 4
          %s165 = int_to_ptr.vmem [resolvable:$true] %s164
          %167 = dma.hbm_to_vmem [thread:$0]  %s162, 32, %s165, %s153
        $region24: #{tpu_custom_call.1} parent=15 // pred_fallthru
          _
      $region16: #{tpu_custom_call.1} parent=5 // pred_fallthru
        _
      %p168 = scmp.le.s32.totalorder 1, %s14
      %p169 = scmp.lt.s32.totalorder %s14, 3
      %p170 = pnand %p168, %p169
      %p171 = pneg %p170
      // Predicated region
      $region25: #{tpu_custom_call.1} parent=5 // pred_check
        _
      $region26: #{tpu_custom_call.1} parent=5 // pred_check_branch
        %173 = sbr.rel (%p170) target = $region28
      $region27: #{tpu_custom_call.1} parent=5 // pred_region
        %s174 = ssub.s32 %s14, 1
        %s175 = sand.u32 %s41, 1
        %s176 = scalar_lea.sflag [#allocation3], %s175
        %s177 = sand.u32 %s41, 1
        %s178 = smul.addr %s177, 10
        %s179 = scalar_lea.vmem [#allocation2], %s178
        // Predicated region
        $region29: #{tpu_custom_call.1} parent=27 // pred_check
          %p180 = pneg %p54
        $region30: #{tpu_custom_call.1} parent=27 // pred_check_branch
          %182 = sbr.rel (%p180) target = $region32
        $region31: #{tpu_custom_call.1} parent=27 // pred_region
          %183 = dma.done %s176, 160
        $region32: #{tpu_custom_call.1} parent=27 // pred_fallthru
          _
        %s184 = sand.u32 %s69, 1
        %s185 = scalar_lea.sflag [#allocation5], %s184
        %s186 = sand.u32 %s69, 1
        %s187 = smul.addr %s186, 2
        %s188 = scalar_lea.vmem [#allocation4], %s187
        // Predicated region
        $region33: #{tpu_custom_call.1} parent=27 // pred_check
          %p189 = pneg %p82
        $region34: #{tpu_custom_call.1} parent=27 // pred_check_branch
          %191 = sbr.rel (%p189) target = $region36
        $region35: #{tpu_custom_call.1} parent=27 // pred_region
          %192 = dma.done %s185, 32
        $region36: #{tpu_custom_call.1} parent=27 // pred_fallthru
          _
        %s193 = sand.u32 %s41, 1
        %s194 = scalar_lea.sflag [#allocation3], %s193
        %s195 = sand.u32 %s41, 1
        %s196 = smul.addr %s195, 10
        %s197 = scalar_lea.vmem [#allocation2], %s196
        %p198 = pneg %p54
        %p199 = pneg %p51
        %s200 = sand.u32 %s69, 1
        %s201 = scalar_lea.sflag [#allocation5], %s200
        %s202 = sand.u32 %s69, 1
        %s203 = smul.addr %s202, 2
        %s204 = scalar_lea.vmem [#allocation4], %s203
        %p205 = pneg %p82
        %p206 = pneg %p79
        %p207 = pneg %p108
        %p208 = pneg %p105
        %p209 = scmp.lt.s32.totalorder %s23, 1
        %s210 = scalar_select %p209, %s23, 1
        %s211 = smul.addr %s210, 3
        %s212 = smul.addr %s211, 8
        %s213 = scalar_lea.vmem %s2, %s212
        %p214 = scmp.lt.s32.totalorder %s23, 1
        %s215 = scalar_select %p214, %s23, 1
        %s216 = smul.addr %s215, 3
        %s217 = smul.addr %s216, 8
        %s218 = scalar_lea.vmem %s2, %s217
        %p219 = scmp.eq.s32.totalorder %s24, 0
        // Predicated region
        $region37: #{tpu_custom_call.1} parent=27 // pred_check
          %p220 = pneg %p219
        $region38: #{tpu_custom_call.1} parent=27 // pred_check_branch
          %222 = sbr.rel (%p220) target = $region40
        $region39: #{tpu_custom_call.1} parent=27 // pred_region
          %223 = vst [vmem:[%s218] sm:$0xff] 0.0
          %224 = vst [vmem:[%s218 + $0x8] sm:$0xff] 0.0
          %225 = vst [vmem:[%s218 + $0x10] sm:$0xf] 0.0
        $region40: #{tpu_custom_call.1} parent=27 // pred_fallthru
          _
        %v226 = vld [vmem:[%s188] sm:$0x3]
        %v227 = vld [vmem:[%s218 + $0x3] sm:$0x1]
        %vm228 = vcmask 1041408
        %v229 = vsel %vm228, %v226, 0.0
        %v230 = vrot.slane %v229, 4
        %v231 = vadd.f32 %v229, %v230
        %v232 = vrot.slane %v231, 2
        %v233 = vadd.f32 %v231, %v232
        %v234 = vrot.slane %v233, 1
        %v235 = vadd.f32 %v233, %v234
        %v236 = vadd.f32 %v227, %v235
        %237 = vst [vmem:[%s218 + $0x3] sm:$0x1] %v236
        %v238 = vld [vmem:[%s179] sm:$0x3]
        %v239 = vlog2.pop %v238
        %v240 = vmul.f32 %v239, 0.6931472
        %v241 = vmax.f32 %v240, -100.0
        %v242 = vsub.f32 1.0, %v238
        %v243 = vlog2.pop %v242
        %v244 = vmul.f32 %v243, 0.6931472
        %v245 = vmax.f32 %v244, -100.0
        %v246 = vsub.f32 %v241, %v245
        %v247 = vmul.f32 %v226, %v246
        %v248 = vadd.f32 %v247, %v245
        %v249 = vld [vmem:[%s218] sm:$0x1]
        %v250 = vsel %vm228, %v248, 0.0
        %v251 = vrot.slane %v250, 4
        %v252 = vadd.f32 %v250, %v251
        %v253 = vrot.slane %v252, 2
        %v254 = vadd.f32 %v252, %v253
        %v255 = vrot.slane %v254, 1
        %v256 = vadd.f32 %v254, %v255
        %v257 = vadd.f32 %v249, %v256
        %258 = vst [vmem:[%s218] sm:$0x1] %v257
        %v259 = vld [vmem:[%s218 + $0x1] sm:$0x1]
        %v260 = vmul.f32 %v238, %v226
        %v261 = vsel %vm228, %v260, 0.0
        %v262 = vrot.slane %v261, 4
        %v263 = vadd.f32 %v261, %v262
        %v264 = vrot.slane %v263, 2
        %v265 = vadd.f32 %v263, %v264
        %v266 = vrot.slane %v265, 1
        %v267 = vadd.f32 %v265, %v266
        %v268 = vadd.f32 %v259, %v267
        %269 = vst [vmem:[%s218 + $0x1] sm:$0x1] %v268
        %v270 = vld [vmem:[%s218 + $0x2] sm:$0x1]
        %v271 = vsel %vm228, %v238, 0.0
        %v272 = vrot.slane %v271, 4
        %v273 = vadd.f32 %v271, %v272
        %v274 = vrot.slane %v273, 2
        %v275 = vadd.f32 %v273, %v274
        %v276 = vrot.slane %v275, 1
        %v277 = vadd.f32 %v275, %v276
        %v278 = vadd.f32 %v270, %v277
        %279 = vst [vmem:[%s218 + $0x2] sm:$0x1] %v278
        %s280 = scalar_lea.vmem %s179, 2 [#allocation2]
        %v281 = vld [vmem:[%s280] sm:$0x3]
        %v282 = vlog2.pop %v281
        %v283 = vmul.f32 %v282, 0.6931472
        %v284 = vmax.f32 %v283, -100.0
        %v285 = vsub.f32 1.0, %v281
        %v286 = vlog2.pop %v285
        %v287 = vmul.f32 %v286, 0.6931472
        %v288 = vmax.f32 %v287, -100.0
        %v289 = vsub.f32 %v284, %v288
        %v290 = vmul.f32 %v226, %v289
        %v291 = vadd.f32 %v290, %v288
        %v292 = vld [vmem:[%s218 + $0x4] sm:$0x1]
        %v293 = vsel %vm228, %v291, 0.0
        %v294 = vrot.slane %v293, 4
        %v295 = vadd.f32 %v293, %v294
        %v296 = vrot.slane %v295, 2
        %v297 = vadd.f32 %v295, %v296
        %v298 = vrot.slane %v297, 1
        %v299 = vadd.f32 %v297, %v298
        %v300 = vadd.f32 %v292, %v299
        %301 = vst [vmem:[%s218 + $0x4] sm:$0x1] %v300
        %v302 = vld [vmem:[%s218 + $0x5] sm:$0x1]
        %v303 = vmul.f32 %v281, %v226
        %v304 = vsel %vm228, %v303, 0.0
        %v305 = vrot.slane %v304, 4
        %v306 = vadd.f32 %v304, %v305
        %v307 = vrot.slane %v306, 2
        %v308 = vadd.f32 %v306, %v307
        %v309 = vrot.slane %v308, 1
        %v310 = vadd.f32 %v308, %v309
        %v311 = vadd.f32 %v302, %v310
        %312 = vst [vmem:[%s218 + $0x5] sm:$0x1] %v311
        %v313 = vld [vmem:[%s218 + $0x6] sm:$0x1]
        %v314 = vsel %vm228, %v281, 0.0
        %v315 = vrot.slane %v314, 4
        %v316 = vadd.f32 %v314, %v315
        %v317 = vrot.slane %v316, 2
        %v318 = vadd.f32 %v316, %v317
        %v319 = vrot.slane %v318, 1
        %v320 = vadd.f32 %v318, %v319
        %v321 = vadd.f32 %v313, %v320
        %322 = vst [vmem:[%s218 + $0x6] sm:$0x1] %v321
        %s323 = scalar_lea.vmem %s179, 4 [#allocation2]
        %v324 = vld [vmem:[%s323] sm:$0x3]
        %v325 = vlog2.pop %v324
        %v326 = vmul.f32 %v325, 0.6931472
        %v327 = vmax.f32 %v326, -100.0
        %v328 = vsub.f32 1.0, %v324
        %v329 = vlog2.pop %v328
        %v330 = vmul.f32 %v329, 0.6931472
        %v331 = vmax.f32 %v330, -100.0
        %v332 = vsub.f32 %v327, %v331
        %v333 = vmul.f32 %v226, %v332
        %v334 = vadd.f32 %v333, %v331
        %v335 = vld [vmem:[%s218 + $0x8] sm:$0x1]
        %v336 = vsel %vm228, %v334, 0.0
        %v337 = vrot.slane %v336, 4
        %v338 = vadd.f32 %v336, %v337
        %v339 = vrot.slane %v338, 2
        %v340 = vadd.f32 %v338, %v339
        %v341 = vrot.slane %v340, 1
        %v342 = vadd.f32 %v340, %v341
        %v343 = vadd.f32 %v335, %v342
        %344 = vst [vmem:[%s218 + $0x8] sm:$0x1] %v343
        %v345 = vld [vmem:[%s218 + $0x9] sm:$0x1]
        %v346 = vmul.f32 %v324, %v226
        %v347 = vsel %vm228, %v346, 0.0
        %v348 = vrot.slane %v347, 4
        %v349 = vadd.f32 %v347, %v348
        %v350 = vrot.slane %v349, 2
        %v351 = vadd.f32 %v349, %v350
        %v352 = vrot.slane %v351, 1
        %v353 = vadd.f32 %v351, %v352
        %v354 = vadd.f32 %v345, %v353
        %355 = vst [vmem:[%s218 + $0x9] sm:$0x1] %v354
        %v356 = vld [vmem:[%s218 + $0xa] sm:$0x1]
        %v357 = vsel %vm228, %v324, 0.0
        %v358 = vrot.slane %v357, 4
        %v359 = vadd.f32 %v357, %v358
        %v360 = vrot.slane %v359, 2
        %v361 = vadd.f32 %v359, %v360
        %v362 = vrot.slane %v361, 1
        %v363 = vadd.f32 %v361, %v362
        %v364 = vadd.f32 %v356, %v363
        %365 = vst [vmem:[%s218 + $0xa] sm:$0x1] %v364
        %s366 = scalar_lea.vmem %s179, 6 [#allocation2]
        %v367 = vld [vmem:[%s366] sm:$0x3]
        %v368 = vlog2.pop %v367
        %v369 = vmul.f32 %v368, 0.6931472
        %v370 = vmax.f32 %v369, -100.0
        %v371 = vsub.f32 1.0, %v367
        %v372 = vlog2.pop %v371
        %v373 = vmul.f32 %v372, 0.6931472
        %v374 = vmax.f32 %v373, -100.0
        %v375 = vsub.f32 %v370, %v374
        %v376 = vmul.f32 %v226, %v375
        %v377 = vadd.f32 %v376, %v374
        %v378 = vld [vmem:[%s218 + $0xc] sm:$0x1]
        %v379 = vsel %vm228, %v377, 0.0
        %v380 = vrot.slane %v379, 4
        %v381 = vadd.f32 %v379, %v380
        %v382 = vrot.slane %v381, 2
        %v383 = vadd.f32 %v381, %v382
        %v384 = vrot.slane %v383, 1
        %v385 = vadd.f32 %v383, %v384
        %v386 = vadd.f32 %v378, %v385
        %387 = vst [vmem:[%s218 + $0xc] sm:$0x1] %v386
        %v388 = vld [vmem:[%s218 + $0xd] sm:$0x1]
        %v389 = vmul.f32 %v367, %v226
        %v390 = vsel %vm228, %v389, 0.0
        %v391 = vrot.slane %v390, 4
        %v392 = vadd.f32 %v390, %v391
        %v393 = vrot.slane %v392, 2
        %v394 = vadd.f32 %v392, %v393
        %v395 = vrot.slane %v394, 1
        %v396 = vadd.f32 %v394, %v395
        %v397 = vadd.f32 %v388, %v396
        %398 = vst [vmem:[%s218 + $0xd] sm:$0x1] %v397
        %v399 = vld [vmem:[%s218 + $0xe] sm:$0x1]
        %v400 = vsel %vm228, %v367, 0.0
        %v401 = vrot.slane %v400, 4
        %v402 = vadd.f32 %v400, %v401
        %v403 = vrot.slane %v402, 2
        %v404 = vadd.f32 %v402, %v403
        %v405 = vrot.slane %v404, 1
        %v406 = vadd.f32 %v404, %v405
        %v407 = vadd.f32 %v399, %v406
        %408 = vst [vmem:[%s218 + $0xe] sm:$0x1] %v407
        %s409 = scalar_lea.vmem %s179, 8 [#allocation2]
        %v410 = vld [vmem:[%s409] sm:$0x3]
        %v411 = vlog2.pop %v410
        %v412 = vmul.f32 %v411, 0.6931472
        %v413 = vmax.f32 %v412, -100.0
        %v414 = vsub.f32 1.0, %v410
        %v415 = vlog2.pop %v414
        %v416 = vmul.f32 %v415, 0.6931472
        %v417 = vmax.f32 %v416, -100.0
        %v418 = vsub.f32 %v413, %v417
        %v419 = vmul.f32 %v226, %v418
        %v420 = vadd.f32 %v419, %v417
        %v421 = vld [vmem:[%s218 + $0x10] sm:$0x1]
        %v422 = vsel %vm228, %v420, 0.0
        %v423 = vrot.slane %v422, 4
        %v424 = vadd.f32 %v422, %v423
        %v425 = vrot.slane %v424, 2
        %v426 = vadd.f32 %v424, %v425
        %v427 = vrot.slane %v426, 1
        %v428 = vadd.f32 %v426, %v427
        %v429 = vadd.f32 %v421, %v428
        %430 = vst [vmem:[%s218 + $0x10] sm:$0x1] %v429
        %v431 = vld [vmem:[%s218 + $0x11] sm:$0x1]
        %v432 = vmul.f32 %v410, %v226
        %v433 = vsel %vm228, %v432, 0.0
        %v434 = vrot.slane %v433, 4
        %v435 = vadd.f32 %v433, %v434
        %v436 = vrot.slane %v435, 2
        %v437 = vadd.f32 %v435, %v436
        %v438 = vrot.slane %v437, 1
        %v439 = vadd.f32 %v437, %v438
        %v440 = vadd.f32 %v431, %v439
        %441 = vst [vmem:[%s218 + $0x11] sm:$0x1] %v440
        %v442 = vld [vmem:[%s218 + $0x12] sm:$0x1]
        %v443 = vsel %vm228, %v410, 0.0
        %v444 = vrot.slane %v443, 4
        %v445 = vadd.f32 %v443, %v444
        %v446 = vrot.slane %v445, 2
        %v447 = vadd.f32 %v445, %v446
        %v448 = vrot.slane %v447, 1
        %v449 = vadd.f32 %v447, %v448
        %v450 = vadd.f32 %v442, %v449
        %451 = vst [vmem:[%s218 + $0x12] sm:$0x1] %v450
        %p452 = scmp.lt.s32.totalorder %s23, 1
        %s453 = scalar_select %p452, %s23, 1
        %s454 = smul.addr %s453, 3
        %s455 = smul.addr %s454, 8
        %s456 = scalar_lea.vmem %s2, %s455
        // Predicated region
        $region41: #{tpu_custom_call.1} parent=27 // pred_check
          %p457 = pneg %p105
        $region42: #{tpu_custom_call.1} parent=27 // pred_check_branch
          %459 = sbr.rel (%p457) target = $region44
        $region43: #{tpu_custom_call.1} parent=27 // pred_region
          _
        $region44: #{tpu_custom_call.1} parent=27 // pred_fallthru
          _
      $region28: #{tpu_custom_call.1} parent=5 // pred_fallthru
        _
      %p460 = scmp.le.s32.totalorder 2, %s14
      // Predicated region
      $region45: #{tpu_custom_call.1} parent=5 // pred_check
        %p461 = pneg %p460
      $region46: #{tpu_custom_call.1} parent=5 // pred_check_branch
        %463 = sbr.rel (%p461) target = $region48
      $region47: #{tpu_custom_call.1} parent=5 // pred_region
        %s464 = ssub.s32 %s14, 2
        // Predicated region
        $region49: #{tpu_custom_call.1} parent=47 // pred_check
          %p465 = pneg %p111
        $region50: #{tpu_custom_call.1} parent=47 // pred_check_branch
          %467 = sbr.rel (%p465) target = $region52
        $region51: #{tpu_custom_call.1} parent=47 // pred_region
          %p468 = scmp.lt.s32.totalorder %s25, 1
          %s469 = scalar_select %p468, %s25, 1
          %s470 = smul.addr %s469, 3
          %s471 = smul.addr %s470, 8
          %s472 = scalar_lea.vmem %s2, %s471
        $region52: #{tpu_custom_call.1} parent=47 // pred_fallthru
          _
      $region48: #{tpu_custom_call.1} parent=5 // pred_fallthru
        _
    $region6: #{tpu_custom_call.1} parent=1 // loop_footer
      %s18 = sadd.s32 1, %s14
    $region7: #{tpu_custom_call.1} parent=1 // loop_footer_branch
      %13 = sbr.rel target = $region3
    $region8: #{tpu_custom_call.1} parent=1 // loop_exit
      _
    %473 = vsyncpa [#allocation3], 1
    %s474 = scalar_lea.sflag [#allocation3], 1
    %475 = vsyncpa %s474, 1
    %476 = vsyncpa [#allocation5], 1
    %s477 = scalar_lea.sflag [#allocation5], 1
    %478 = vsyncpa %s477, 1

</llo_original>
